<compile_context>
chip_gen: v7x
topology: tpu7x:2x2x1
jax: 0.10.0
libtpu: 0.0.40
codegen_flags: <defaults>
</compile_context>

<pallas_src>
import numpy as np
import jax
import jax.numpy as jnp
from jax.experimental import pallas as pl
from jax.experimental.pallas import tpu as pltpu

HIDDEN = 64
A_PAD = 128      # actor-head logits padded to a full 128-lane tile
OUT_W = 8        # output slab width (col0=logp, col1=ent, col2=val)
NEG_INF = -1e30  # finite -> exp underflows to exactly 0 on padded lanes


def _round_up(x, m):
    return ((x + m - 1) // m) * m


def _cdiv(a, b):
    return -(-a // b)


# ----------------------------- kernel ---------------------------------------

def make_kernel(num_heads, a_pad, out_w, weight_dtype):
    def kernel(state_ref, w1_ref, b1_ref, w2_ref, b2_ref, wf_ref, bf_ref,
               ids_ref, out_ref):
        # ---- fused MLP (MXU operands in weight_dtype, accum + bias in f32) ----
        x = state_ref[...].astype(weight_dtype)                             # [TB, S]
        h = jnp.tanh(jnp.dot(x, w1_ref[...],
                             preferred_element_type=jnp.float32) + b1_ref[...])
        h = jnp.tanh(jnp.dot(h.astype(weight_dtype), w2_ref[...],
                             preferred_element_type=jnp.float32) + b2_ref[...])
        # fused heads + critic output: [TB, (H+1)*A_PAD]
        #   block h (h < H): head-h logits (padded lanes = NEG_INF via bias)
        #   block H, lane 0: critic value
        z = jnp.dot(h.astype(weight_dtype), wf_ref[...],
                    preferred_element_type=jnp.float32) + bf_ref[...]

        # ---- per-sample head selection from the int32 id slab ----
        ids = ids_ref[...]                                                   # [TB, 2] int32
        ev_id = ids[:, 0:1]                                                  # [TB, 1]
        act_id = ids[:, 1:2]                                                 # [TB, 1]
        logits = z[:, 0:a_pad]
        for h_idx in range(1, num_heads):                                    # static, tiny
            logits = jnp.where(ev_id == h_idx,
                               z[:, h_idx * a_pad:(h_idx + 1) * a_pad], logits)

        # ---- exact softmax statistics (no approx reciprocal) ----
        m = jnp.max(logits, axis=-1, keepdims=True)
        shifted = logits - m                                                 # padded lanes ~ -1e30
        e = jnp.exp(shifted)                                                 # padded lanes -> 0 exactly
        s = jnp.sum(e, axis=-1, keepdims=True)
        log_s = jnp.log(s)

        lane = jax.lax.broadcasted_iota(jnp.int32, shifted.shape, 1)         # [TB, A_PAD]
        logp = jnp.sum(jnp.where(lane == act_id, shifted, 0.0),
                       axis=-1, keepdims=True) - log_s                       # [TB, 1]
        # entropy = -sum(p*log p) = log(s) - sum(e*shifted)/s  (0 * -1e30 = -0.0, safe)
        ent = log_s - jnp.sum(e * shifted, axis=-1, keepdims=True) / s       # [TB, 1]
        val = z[:, num_heads * a_pad:num_heads * a_pad + 1]                  # [TB, 1]

        # ---- narrow output slab: col0=logp, col1=ent, col2=val, rest 0 ----
        lane8 = jax.lax.broadcasted_iota(jnp.int32, (out_ref.shape[0], out_w), 1)
        out_ref[...] = jnp.where(lane8 == 0, logp,
                       jnp.where(lane8 == 1, ent,
                       jnp.where(lane8 == 2, val, 0.0)))

    return kernel


# ----------------------------- wrapper ---------------------------------------

def actor_critic_evaluate(state, action, event_type, packed, num_heads,
                          a_pad=A_PAD, out_w=OUT_W, block_batch=2048):
    """Returns (action_logprobs [B], value [B], dist_entropy [B])."""
    B, S = state.shape
    weight_dtype = packed['w_enc1'].dtype

    # one tiny int32 id slab instead of two [B,128] f32 one-hots
    ids = jnp.stack([event_type.astype(jnp.int32), action.astype(jnp.int32)],
                    axis=-1)                                                 # [B, 2]

    # batch tile: multiple of 8 sublanes; no padding copies -- partial last
    # tile reads are per-row garbage (sliced off) and its writes are masked.
    tb = min(block_batch, _round_up(B, 8))
    grid_n = _cdiv(B, tb)
    # prefer an even, >=2-step grid so v7x's two TensorCores both get work
    if grid_n > 1 and grid_n % 2 == 1:
        tb2 = _round_up(_cdiv(B, grid_n + 1), 8)
        if tb2 >= 8 and _cdiv(B, tb2) % 2 == 0:
            tb = tb2
            grid_n = _cdiv(B, tb)

    def row(width):
        return pl.BlockSpec((tb, width), lambda i: (i, 0))

    def resident(arr):
        return pl.BlockSpec(arr.shape, lambda i: (0, 0))    # stays VMEM-resident

    kernel = make_kernel(num_heads, a_pad, out_w, weight_dtype)
    out = pl.pallas_call(
        kernel,
        out_shape=jax.ShapeDtypeStruct((B, out_w), jnp.float32),
        grid=(grid_n,),
        in_specs=[row(S),
                  resident(packed['w_enc1']), resident(packed['b_enc1']),
                  resident(packed['w_enc2']), resident(packed['b_enc2']),
                  resident(packed['w_fin']), resident(packed['b_fin']),
                  row(2)],
        out_specs=row(out_w),
        compiler_params=pltpu.CompilerParams(
            dimension_semantics=("parallel",),        # megacore split on v7x
            vmem_limit_bytes=48 * 1024 * 1024),       # <= ~48 MiB (v7x has 64)
    )(state, packed['w_enc1'], packed['b_enc1'], packed['w_enc2'],
      packed['b_enc2'], packed['w_fin'], packed['b_fin'], ids)

    return out[:, 0], out[:, 2], out[:, 1]   # logp, value, entropy


# ---------------- parameter setup (PyTorch-style init, unfused "raw") --------

def _linear(key, fan_in, fan_out):
    kw, kb = jax.random.split(key)
    bound = 1.0 / np.sqrt(fan_in)
    w = jax.random.uniform(kw, (fan_in, fan_out), jnp.float32, -bound, bound)
    b = jax.random.uniform(kb, (fan_out,), jnp.float32, -bound, bound)
    return w, b


def init_raw_params(key, state_dim, action_dims):
    keys = jax.random.split(key, 5 + len(action_dims))
    w1, b1 = _linear(keys[0], state_dim, HIDDEN)
    w2, b2 = _linear(keys[1], HIDDEN, HIDDEN)
    wc1, bc1 = _linear(keys[2], state_dim, HIDDEN)
    wc2, bc2 = _linear(keys[3], HIDDEN, HIDDEN)
    wc3, bc3 = _linear(keys[4], HIDDEN, 1)
    head_w, head_b = [], []
    for i, dim in enumerate(action_dims):
        hw, hb = _linear(keys[5 + i], HIDDEN, dim)
        head_w.append(hw)
        head_b.append(hb)
    return dict(w1=w1, b1=b1, w2=w2, b2=b2, head_w=head_w, head_b=head_b,
                wc1=wc1, bc1=bc1, wc2=wc2, bc2=bc2, wc3=wc3, bc3=bc3)


def pack_params(raw, action_dims, a_pad=A_PAD, weight_dtype=jnp.float32):
    """Fuse actor+critic layers and all heads into full-lane-width weights.

    weight_dtype=jnp.bfloat16 enables the bf16-MXU path (recommended on
    v6e/v7x); biases (incl. the NEG_INF padding mask) always stay f32.
    """
    H = len(action_dims)
    w_enc1 = jnp.concatenate([raw['w1'], raw['wc1']], axis=1)               # [S, 128]
    b_enc1 = jnp.concatenate([raw['b1'], raw['bc1']])[None, :]              # [1, 128]

    w_enc2 = jnp.zeros((2 * HIDDEN, 2 * HIDDEN), jnp.float32)               # [128, 128]
    w_enc2 = w_enc2.at[:HIDDEN, :HIDDEN].set(raw['w2'])
    w_enc2 = w_enc2.at[HIDDEN:, HIDDEN:].set(raw['wc2'])
    b_enc2 = jnp.concatenate([raw['b2'], raw['bc2']])[None, :]              # [1, 128]

    w_fin = jnp.zeros((2 * HIDDEN, (H + 1) * a_pad), jnp.float32)           # [128, (H+1)*128]
    b_fin = jnp.zeros(((H + 1) * a_pad,), jnp.float32)
    for h, dim in enumerate(action_dims):
        w_fin = w_fin.at[:HIDDEN, h * a_pad:h * a_pad + dim].set(raw['head_w'][h])
        b_fin = b_fin.at[h * a_pad:h * a_pad + dim].set(raw['head_b'][h])
        # bake padding mask into the bias (weights are zero on these lanes)
        b_fin = b_fin.at[h * a_pad + dim:(h + 1) * a_pad].set(NEG_INF)
    w_fin = w_fin.at[HIDDEN:, H * a_pad:H * a_pad + 1].set(raw['wc3'])
    b_fin = b_fin.at[H * a_pad].set(raw['bc3'][0])

    return dict(w_enc1=w_enc1.astype(weight_dtype), b_enc1=b_enc1,
                w_enc2=w_enc2.astype(weight_dtype), b_enc2=b_enc2,
                w_fin=w_fin.astype(weight_dtype), b_fin=b_fin[None, :])


# ---------------- numpy reference (mirrors PyTorch evaluate()) ----------------

def reference_evaluate(state, action, event_type, raw):
    def f64(v):
        return [np.asarray(x, np.float64) for x in v] if isinstance(v, list) \
            else np.asarray(v, np.float64)
    rp = {k: f64(v) for k, v in raw.items()}
    x = np.asarray(state, np.float64)

    h = np.tanh(x @ rp['w1'] + rp['b1'])
    h = np.tanh(h @ rp['w2'] + rp['b2'])
    logps, ents = [], []
    for i in range(x.shape[0]):
        et = int(event_type[i])
        lg = h[i] @ rp['head_w'][et] + rp['head_b'][et]
        lg = lg - lg.max()
        p = np.exp(lg)
        p /= p.sum()
        logps.append(np.log(p[int(action[i])]))
        ents.append(-(p * np.log(p)).sum())

    c = np.tanh(x @ rp['wc1'] + rp['bc1'])
    c = np.tanh(c @ rp['wc2'] + rp['bc2'])
    val = (c @ rp['wc3'] + rp['bc3'])[:, 0]
    return np.array(logps), val, np.array(ents)


if __name__ == "__main__":
    key = jax.random.PRNGKey(0)
    state_dim = 16
    action_dims = (5, 7)          # two actor heads with different action counts
    batch = 24                    # exercises a 3-step batch grid at TB=8

    kp, ks, ke, ka = jax.random.split(key, 4)
    raw = init_raw_params(kp, state_dim, action_dims)
    num_heads = len(action_dims)

    state = jax.random.normal(ks, (batch, state_dim), jnp.float32)
    event_type = jax.random.randint(ke, (batch,), 0, num_heads)
    per_sample_dim = jnp.asarray(action_dims, jnp.int32)[event_type]
    action = jax.random.randint(ka, (batch,), 0, 10_000) % per_sample_dim

    r_logp, r_val, r_ent = reference_evaluate(np.asarray(state), np.asarray(action),
                                              np.asarray(event_type), raw)

    # ---- f32 path: exact math, tight tolerances ----
    packed = pack_params(raw, action_dims, weight_dtype=jnp.float32)
    logp, val, ent = actor_critic_evaluate(state, action, event_type, packed,
                                           num_heads, block_batch=8)
    jax.block_until_ready((logp, val, ent))
    assert np.allclose(np.asarray(logp), r_logp, atol=1e-3), "log_prob mismatch (f32)"
    assert np.allclose(np.asarray(val), r_val, atol=1e-3), "value mismatch (f32)"
    assert np.allclose(np.asarray(ent), r_ent, atol=1e-3), "entropy mismatch (f32)"
    assert np.all(np.isfinite(np.asarray(logp)))

    # ---- bf16-MXU path (v6e/v7x perf mode): operand-rounding-limited ----
    packed_bf16 = pack_params(raw, action_dims, weight_dtype=jnp.bfloat16)
    logp_b, val_b, ent_b = actor_critic_evaluate(state, action, event_type,
                                                 packed_bf16, num_heads,
                                                 block_batch=8)
    jax.block_until_ready((logp_b, val_b, ent_b))
    assert np.allclose(np.asarray(logp_b), r_logp, atol=5e-2), "log_prob mismatch (bf16)"
    assert np.allclose(np.asarray(val_b), r_val, atol=5e-2), "value mismatch (bf16)"
    assert np.allclose(np.asarray(ent_b), r_ent, atol=5e-2), "entropy mismatch (bf16)"

    print("KERNEL_OK")
</pallas_src>

<mosaic_0001>
module attributes {stable_mosaic.version = 11 : i64} {
  func.func @kernel(%arg0: i32, %arg1: memref<8x16xf32, #tpu.memory_space<vmem>>, %arg2: memref<16x128xf32, #tpu.memory_space<vmem>>, %arg3: memref<1x128xf32, #tpu.memory_space<vmem>>, %arg4: memref<128x128xf32, #tpu.memory_space<vmem>>, %arg5: memref<1x128xf32, #tpu.memory_space<vmem>>, %arg6: memref<128x384xf32, #tpu.memory_space<vmem>>, %arg7: memref<1x384xf32, #tpu.memory_space<vmem>>, %arg8: memref<8x2xi32, #tpu.memory_space<vmem>>, %arg9: memref<8x8xf32, #tpu.memory_space<vmem>>) attributes {dimension_semantics = [#tpu.dimension_semantics<parallel>], iteration_bounds = array<i64: 3>, scalar_prefetch = 0 : i64, scratch_operands = 0 : i64, tpu.core_type = #tpu.core_type<tc>, window_params = [{transform_indices = @transform_0, window_bounds = array<i64: 8, 16>}, {pipeline_mode = #tpu.pipeline_mode<synchronous>, transform_indices = @transform_1, window_bounds = array<i64: 16, 128>}, {pipeline_mode = #tpu.pipeline_mode<synchronous>, transform_indices = @transform_2, window_bounds = array<i64: 1, 128>}, {pipeline_mode = #tpu.pipeline_mode<synchronous>, transform_indices = @transform_3, window_bounds = array<i64: 128, 128>}, {pipeline_mode = #tpu.pipeline_mode<synchronous>, transform_indices = @transform_4, window_bounds = array<i64: 1, 128>}, {pipeline_mode = #tpu.pipeline_mode<synchronous>, transform_indices = @transform_5, window_bounds = array<i64: 128, 384>}, {pipeline_mode = #tpu.pipeline_mode<synchronous>, transform_indices = @transform_6, window_bounds = array<i64: 1, 384>}, {transform_indices = @transform_7, window_bounds = array<i64: 8, 2>}, {transform_indices = @transform_8, window_bounds = array<i64: 8, 8>}]} {
    %c0 = arith.constant 0 : index
    %c0_0 = arith.constant 0 : index
    %0 = vector.load %arg1[%c0, %c0_0] : memref<8x16xf32, #tpu.memory_space<vmem>>, vector<8x16xf32>
    %c0_1 = arith.constant 0 : index
    %c0_2 = arith.constant 0 : index
    %1 = vector.load %arg2[%c0_1, %c0_2] : memref<16x128xf32, #tpu.memory_space<vmem>>, vector<16x128xf32>
    %cst = arith.constant dense<0.000000e+00> : vector<8x128xf32>
    %2 = tpu.matmul %0, %1, %cst {dimension_numbers = #tpu.dot_dimension_numbers<[1], [0], [0], [1], [0, 0, 1, 1], [], []>} : vector<8x16xf32>, vector<16x128xf32>, vector<8x128xf32> -> vector<8x128xf32>
    %c0_3 = arith.constant 0 : index
    %c0_4 = arith.constant 0 : index
    %3 = vector.load %arg3[%c0_3, %c0_4] : memref<1x128xf32, #tpu.memory_space<vmem>>, vector<1x128xf32>
    %4 = vector.broadcast %3 : vector<1x128xf32> to vector<8x128xf32>
    %5 = arith.addf %2, %4 : vector<8x128xf32>
    %6 = math.tanh %5 : vector<8x128xf32>
    %c0_5 = arith.constant 0 : index
    %c0_6 = arith.constant 0 : index
    %7 = vector.load %arg4[%c0_5, %c0_6] : memref<128x128xf32, #tpu.memory_space<vmem>>, vector<128x128xf32>
    %cst_7 = arith.constant dense<0.000000e+00> : vector<8x128xf32>
    %8 = tpu.matmul %6, %7, %cst_7 {dimension_numbers = #tpu.dot_dimension_numbers<[1], [0], [0], [1], [0, 0, 1, 1], [], []>} : vector<8x128xf32>, vector<128x128xf32>, vector<8x128xf32> -> vector<8x128xf32>
    %c0_8 = arith.constant 0 : index
    %c0_9 = arith.constant 0 : index
    %9 = vector.load %arg5[%c0_8, %c0_9] : memref<1x128xf32, #tpu.memory_space<vmem>>, vector<1x128xf32>
    %10 = vector.broadcast %9 : vector<1x128xf32> to vector<8x128xf32>
    %11 = arith.addf %8, %10 : vector<8x128xf32>
    %12 = math.tanh %11 : vector<8x128xf32>
    %c0_10 = arith.constant 0 : index
    %c0_11 = arith.constant 0 : index
    %13 = vector.load %arg6[%c0_10, %c0_11] : memref<128x384xf32, #tpu.memory_space<vmem>>, vector<128x384xf32>
    %cst_12 = arith.constant dense<0.000000e+00> : vector<8x384xf32>
    %14 = tpu.matmul %12, %13, %cst_12 {dimension_numbers = #tpu.dot_dimension_numbers<[1], [0], [0], [1], [0, 0, 1, 1], [], []>} : vector<8x128xf32>, vector<128x384xf32>, vector<8x384xf32> -> vector<8x384xf32>
    %c0_13 = arith.constant 0 : index
    %c0_14 = arith.constant 0 : index
    %15 = vector.load %arg7[%c0_13, %c0_14] : memref<1x384xf32, #tpu.memory_space<vmem>>, vector<1x384xf32>
    %16 = vector.broadcast %15 : vector<1x384xf32> to vector<8x384xf32>
    %17 = arith.addf %14, %16 : vector<8x384xf32>
    %c0_15 = arith.constant 0 : index
    %c0_16 = arith.constant 0 : index
    %18 = vector.load %arg8[%c0_15, %c0_16] : memref<8x2xi32, #tpu.memory_space<vmem>>, vector<8x2xi32>
    %19 = vector.extract_strided_slice %18 {offsets = [0, 0], sizes = [8, 1], strides = [1, 1]} : vector<8x2xi32> to vector<8x1xi32>
    %20 = vector.extract_strided_slice %18 {offsets = [0, 1], sizes = [8, 1], strides = [1, 1]} : vector<8x2xi32> to vector<8x1xi32>
    %21 = vector.extract_strided_slice %17 {offsets = [0, 0], sizes = [8, 128], strides = [1, 1]} : vector<8x384xf32> to vector<8x128xf32>
    %c1_i32 = arith.constant 1 : i32
    %22 = vector.broadcast %c1_i32 : i32 to vector<8x1xi32>
    %23 = arith.cmpi eq, %19, %22 : vector<8x1xi32>
    %24 = vector.extract_strided_slice %17 {offsets = [0, 128], sizes = [8, 128], strides = [1, 1]} : vector<8x384xf32> to vector<8x128xf32>
    %25 = vector.shape_cast %23 : vector<8x1xi1> to vector<8x1xi1>
    %26 = vector.broadcast %25 : vector<8x1xi1> to vector<8x128xi1>
    %27 = arith.select %26, %24, %21 : vector<8x128xi1>, vector<8x128xf32>
    %cst_17 = arith.constant dense<0xFF800000> : vector<8xf32>
    %28 = vector.multi_reduction <maximumf>, %27, %cst_17 [1] : vector<8x128xf32> to vector<8xf32>
    %29 = vector.shape_cast %28 : vector<8xf32> to vector<8x1xf32>
    %30 = vector.broadcast %29 : vector<8x1xf32> to vector<8x128xf32>
    %31 = arith.subf %27, %30 : vector<8x128xf32>
    %32 = math.exp %31 : vector<8x128xf32>
    %cst_18 = arith.constant dense<0.000000e+00> : vector<8xf32>
    %33 = vector.multi_reduction <add>, %32, %cst_18 [1] : vector<8x128xf32> to vector<8xf32>
    %34 = vector.shape_cast %33 : vector<8xf32> to vector<8x1xf32>
    %35 = math.log %34 : vector<8x1xf32>
    %36 = tpu.iota {dimensions = array<i32: 1>} : vector<8x128xi32>
    %37 = vector.broadcast %20 : vector<8x1xi32> to vector<8x128xi32>
    %38 = arith.cmpi eq, %36, %37 : vector<8x128xi32>
    %cst_19 = arith.constant 0.000000e+00 : f32
    %39 = vector.broadcast %cst_19 : f32 to vector<8x128xf32>
    %40 = arith.select %38, %31, %39 : vector<8x128xi1>, vector<8x128xf32>
    %cst_20 = arith.constant dense<0.000000e+00> : vector<8xf32>
    %41 = vector.multi_reduction <add>, %40, %cst_20 [1] : vector<8x128xf32> to vector<8xf32>
    %42 = vector.shape_cast %41 : vector<8xf32> to vector<8x1xf32>
    %43 = arith.subf %42, %35 : vector<8x1xf32>
    %44 = arith.mulf %32, %31 : vector<8x128xf32>
    %cst_21 = arith.constant dense<0.000000e+00> : vector<8xf32>
    %45 = vector.multi_reduction <add>, %44, %cst_21 [1] : vector<8x128xf32> to vector<8xf32>
    %46 = vector.shape_cast %45 : vector<8xf32> to vector<8x1xf32>
    %47 = arith.divf %46, %34 : vector<8x1xf32>
    %48 = arith.subf %35, %47 : vector<8x1xf32>
    %49 = vector.extract_strided_slice %17 {offsets = [0, 256], sizes = [8, 1], strides = [1, 1]} : vector<8x384xf32> to vector<8x1xf32>
    %50 = tpu.iota {dimensions = array<i32: 1>} : vector<8x8xi32>
    %c0_i32 = arith.constant 0 : i32
    %51 = vector.broadcast %c0_i32 : i32 to vector<8x8xi32>
    %52 = arith.cmpi eq, %50, %51 : vector<8x8xi32>
    %c1_i32_22 = arith.constant 1 : i32
    %53 = vector.broadcast %c1_i32_22 : i32 to vector<8x8xi32>
    %54 = arith.cmpi eq, %50, %53 : vector<8x8xi32>
    %c2_i32 = arith.constant 2 : i32
    %55 = vector.broadcast %c2_i32 : i32 to vector<8x8xi32>
    %56 = arith.cmpi eq, %50, %55 : vector<8x8xi32>
    %cst_23 = arith.constant 0.000000e+00 : f32
    %57 = vector.shape_cast %49 : vector<8x1xf32> to vector<8x1xf32>
    %58 = vector.broadcast %57 : vector<8x1xf32> to vector<8x8xf32>
    %59 = vector.broadcast %cst_23 : f32 to vector<8x8xf32>
    %60 = arith.select %56, %58, %59 : vector<8x8xi1>, vector<8x8xf32>
    %61 = vector.shape_cast %48 : vector<8x1xf32> to vector<8x1xf32>
    %62 = vector.broadcast %61 : vector<8x1xf32> to vector<8x8xf32>
    %63 = arith.select %54, %62, %60 : vector<8x8xi1>, vector<8x8xf32>
    %64 = vector.shape_cast %43 : vector<8x1xf32> to vector<8x1xf32>
    %65 = vector.broadcast %64 : vector<8x1xf32> to vector<8x8xf32>
    %66 = arith.select %52, %65, %63 : vector<8x8xi1>, vector<8x8xf32>
    %c0_24 = arith.constant 0 : index
    %c0_25 = arith.constant 0 : index
    %67 = vector.load %arg9[%c0_24, %c0_25] : memref<8x8xf32, #tpu.memory_space<vmem>>, vector<8x8xf32>
    tpu.vector_store %arg9[%c0_24, %c0_25], %66 {strides = array<i32>} : memref<8x8xf32, #tpu.memory_space<vmem>>, vector<8x8xf32>,
    return
  }
  func.func @transform_0(%arg0: i32) -> (i32, i32) {
    %c0_i32 = arith.constant 0 : i32
    %c0_i32_0 = arith.constant 0 : i32
    return %arg0, %c0_i32 : i32, i32
  }
  func.func @transform_1(%arg0: i32) -> (i32, i32) {
    %c0_i32 = arith.constant 0 : i32
    %c0_i32_0 = arith.constant 0 : i32
    %c0_i32_1 = arith.constant 0 : i32
    return %c0_i32, %c0_i32_0 : i32, i32
  }
  func.func @transform_2(%arg0: i32) -> (i32, i32) {
    %c0_i32 = arith.constant 0 : i32
    %c0_i32_0 = arith.constant 0 : i32
    %c0_i32_1 = arith.constant 0 : i32
    return %c0_i32, %c0_i32_0 : i32, i32
  }
  func.func @transform_3(%arg0: i32) -> (i32, i32) {
    %c0_i32 = arith.constant 0 : i32
    %c0_i32_0 = arith.constant 0 : i32
    %c0_i32_1 = arith.constant 0 : i32
    return %c0_i32, %c0_i32_0 : i32, i32
  }
  func.func @transform_4(%arg0: i32) -> (i32, i32) {
    %c0_i32 = arith.constant 0 : i32
    %c0_i32_0 = arith.constant 0 : i32
    %c0_i32_1 = arith.constant 0 : i32
    return %c0_i32, %c0_i32_0 : i32, i32
  }
  func.func @transform_5(%arg0: i32) -> (i32, i32) {
    %c0_i32 = arith.constant 0 : i32
    %c0_i32_0 = arith.constant 0 : i32
    %c0_i32_1 = arith.constant 0 : i32
    return %c0_i32, %c0_i32_0 : i32, i32
  }
  func.func @transform_6(%arg0: i32) -> (i32, i32) {
    %c0_i32 = arith.constant 0 : i32
    %c0_i32_0 = arith.constant 0 : i32
    %c0_i32_1 = arith.constant 0 : i32
    return %c0_i32, %c0_i32_0 : i32, i32
  }
  func.func @transform_7(%arg0: i32) -> (i32, i32) {
    %c0_i32 = arith.constant 0 : i32
    %c0_i32_0 = arith.constant 0 : i32
    return %arg0, %c0_i32 : i32, i32
  }
  func.func @transform_8(%arg0: i32) -> (i32, i32) {
    %c0_i32 = arith.constant 0 : i32
    %c0_i32_0 = arith.constant 0 : i32
    return %arg0, %c0_i32 : i32, i32
  }
}

</mosaic_0001>

<llo_original>
// kernel: tpu_custom_call.1
$region0: #{tpu_custom_call.1}
  #allocation0 [shape = 'u32[]', space=smem, size = 0x4, offset = 0x4, fixed_abs, tag = 'smem constant byte address 0x4 - core index']
  #allocation1 [shape = 'u32[144,128]{1,0:T(1,128)}', space=vmem, size = 0x12000, scoped, tag = 'internal scratch']
  %s0 = inlined_call_operand.vmem [shape: f32[24,16], index: 0, kind: input, shape index: {}]
  %s1 = inlined_call_operand.vmem [shape: f32[16,128], index: 1, kind: input, shape index: {}]
  %s2 = inlined_call_operand.vmem [shape: f32[1,128], index: 2, kind: input, shape index: {}]
  %s3 = inlined_call_operand.hbm [shape: f32[128,128], index: 3, kind: input, shape index: {}]
  %s4 = inlined_call_operand.vmem [shape: f32[1,128], index: 4, kind: input, shape index: {}]
  %s5 = inlined_call_operand.hbm [shape: f32[128,384], index: 5, kind: input, shape index: {}]
  %s6 = inlined_call_operand.vmem [shape: f32[1,384], index: 6, kind: input, shape index: {}]
  %s7 = inlined_call_operand.vmem [shape: s32[24,2], index: 7, kind: input, shape index: {}]
  %s8 = inlined_call_operand.vmem [shape: f32[24,8], index: 8, kind: output, shape index: {}]
  %s9 = sld [smem:[#allocation0]]
  $region73: #{tpu_custom_call.1} parent=0
    _
  %s11 = ssub.s32 1, %s9
  %s12 = scalar_select 0, %s11, %s9
  $region1: #{tpu_custom_call.1} parent=0
    #allocation2 [shape = 'u8[65536]{0}', space=vmem, size = 0x10000, scoped, tag = 'input window, operand 3, single buffered']
    #allocation3 [shape = 's32[2]{0}', space=sflag, size = 0x8, scoped, tag = 'scoped memory for tpu_custom_call.1']
    #allocation4 [shape = 'u8[196608]{0}', space=vmem, size = 0x30000, scoped, tag = 'input window, operand 5, single buffered']
    #allocation5 [shape = 's32[1]{0}', space=sflag, size = 0x4, scoped, tag = 'scoped memory for tpu_custom_call.1']
    %13 = vsyncpa [#allocation3], 0
    %14 = vsyncpa [#allocation5], 0
    loop: start=0, step=1, limit=5
    $region2: #{tpu_custom_call.1} parent=1 // loop_pre_header
      _
    $region3: #{tpu_custom_call.1} parent=1 // loop_header
      %s16 = sphi 0, %s20
      %p17 = scmp.ge.s32.totalorder %s16, 5
      %s26 = sphi 0, %s28
      %s29 = sphi 0, %s26
      %s30 = sphi 0, %s29
      %s46 = sphi 0, %s30
      %s50 = sphi 0, %s50
      %s52 = sphi 0, %s50
      %s53 = sphi 0, %s52
      %s67 = sphi 0, %s53
      %s71 = sphi 0, %s71
      %s73 = sphi 0, %s71
      %s74 = sphi 0, %s73
      %s88 = sphi 0, %s74
      %s92 = sphi 0, %s92
      %s94 = sphi 0, %s92
      %s95 = sphi 0, %s94
      %s109 = sphi 0, %s95
      %s113 = sphi 0, %s113
      %s115 = sphi 0, %s113
      %s116 = sphi 0, %s115
      %s130 = sphi 0, %s116
      %s134 = sphi 0, %s134
      %s136 = sphi 0, %s134
      %s137 = sphi 0, %s136
      %s151 = sphi 0, %s137
      %s155 = sphi 0, %s155
      %s157 = sphi 0, %s155
      %s158 = sphi 0, %s157
      %s172 = sphi 0, %s158
      %s178 = sphi 0, %s180
      %s181 = sphi 0, %s178
      %s182 = sphi 0, %s181
      %s198 = sphi 0, %s182
      %s204 = sphi 0, %s206
      %s207 = sphi 0, %s204
      %s208 = sphi 0, %s207
      %s224 = sphi 0, %s208
    $region4: #{tpu_custom_call.1} parent=1 // loop_header_branch
      %19 = sbr.rel (%p17) target = $region8
    $region5: #{tpu_custom_call.1} parent=1 // loop_body
      %s21 = ssub.s32 %s16, 1
      %s22 = ssub.s32 %s16, 2
      %s23 = sadd.s32 %s16, 1
      %s24 = ssub.s32 %s16, %s23
      %p25 = scmp.eq.s32.totalorder %s24, 0
      %s27 = sadd.s32 %s26, 1
      %s28 = scalar_select %p25, %s26, %s27
      %p31 = pneg %p25
      %p32 = scmp.eq.s32.totalorder %s16, 2
      %p33 = por %p31, %p32
      %p34 = scmp.ne.s32.totalorder %s26, %s29
      %p35 = scmp.eq.s32.totalorder %s16, 0
      %p36 = por %p34, %p35
      %p37 = scmp.ne.s32.totalorder %s26, %s29
      %p38 = scmp.eq.s32.totalorder %s21, 2
      %p39 = por %p37, %p38
      %p40 = scmp.ne.s32.totalorder %s29, %s30
      %p41 = scmp.eq.s32.totalorder %s21, 0
      %p42 = por %p40, %p41
      %p43 = scmp.ne.s32.totalorder %s29, %s30
      %p44 = scmp.eq.s32.totalorder %s22, 2
      %p45 = por %p43, %p44
      %p47 = scmp.ne.s32.totalorder %s30, %s46
      %p48 = scmp.eq.s32.totalorder %s22, 0
      %p49 = por %p47, %p48
      %s51 = sadd.s32 %s50, 1
      %p54 = scmp.eq.s32.totalorder %s16, 2
      %p55 = scmp.ne.s32.totalorder %s50, %s52
      %p56 = scmp.eq.s32.totalorder %s16, 0
      %p57 = por %p55, %p56
      %p58 = scmp.ne.s32.totalorder %s50, %s52
      %p59 = scmp.eq.s32.totalorder %s21, 2
      %p60 = por %p58, %p59
      %p61 = scmp.ne.s32.totalorder %s52, %s53
      %p62 = scmp.eq.s32.totalorder %s21, 0
      %p63 = por %p61, %p62
      %p64 = scmp.ne.s32.totalorder %s52, %s53
      %p65 = scmp.eq.s32.totalorder %s22, 2
      %p66 = por %p64, %p65
      %p68 = scmp.ne.s32.totalorder %s53, %s67
      %p69 = scmp.eq.s32.totalorder %s22, 0
      %p70 = por %p68, %p69
      %s72 = sadd.s32 %s71, 1
      %p75 = scmp.eq.s32.totalorder %s16, 2
      %p76 = scmp.ne.s32.totalorder %s71, %s73
      %p77 = scmp.eq.s32.totalorder %s16, 0
      %p78 = por %p76, %p77
      %p79 = scmp.ne.s32.totalorder %s71, %s73
      %p80 = scmp.eq.s32.totalorder %s21, 2
      %p81 = por %p79, %p80
      %p82 = scmp.ne.s32.totalorder %s73, %s74
      %p83 = scmp.eq.s32.totalorder %s21, 0
      %p84 = por %p82, %p83
      %p85 = scmp.ne.s32.totalorder %s73, %s74
      %p86 = scmp.eq.s32.totalorder %s22, 2
      %p87 = por %p85, %p86
      %p89 = scmp.ne.s32.totalorder %s74, %s88
      %p90 = scmp.eq.s32.totalorder %s22, 0
      %p91 = por %p89, %p90
      %s93 = sadd.s32 %s92, 1
      %p96 = scmp.eq.s32.totalorder %s16, 2
      %p97 = scmp.ne.s32.totalorder %s92, %s94
      %p98 = scmp.eq.s32.totalorder %s16, 0
      %p99 = por %p97, %p98
      %p100 = scmp.ne.s32.totalorder %s92, %s94
      %p101 = scmp.eq.s32.totalorder %s21, 2
      %p102 = por %p100, %p101
      %p103 = scmp.ne.s32.totalorder %s94, %s95
      %p104 = scmp.eq.s32.totalorder %s21, 0
      %p105 = por %p103, %p104
      %p106 = scmp.ne.s32.totalorder %s94, %s95
      %p107 = scmp.eq.s32.totalorder %s22, 2
      %p108 = por %p106, %p107
      %p110 = scmp.ne.s32.totalorder %s95, %s109
      %p111 = scmp.eq.s32.totalorder %s22, 0
      %p112 = por %p110, %p111
      %s114 = sadd.s32 %s113, 1
      %p117 = scmp.eq.s32.totalorder %s16, 2
      %p118 = scmp.ne.s32.totalorder %s113, %s115
      %p119 = scmp.eq.s32.totalorder %s16, 0
      %p120 = por %p118, %p119
      %p121 = scmp.ne.s32.totalorder %s113, %s115
      %p122 = scmp.eq.s32.totalorder %s21, 2
      %p123 = por %p121, %p122
      %p124 = scmp.ne.s32.totalorder %s115, %s116
      %p125 = scmp.eq.s32.totalorder %s21, 0
      %p126 = por %p124, %p125
      %p127 = scmp.ne.s32.totalorder %s115, %s116
      %p128 = scmp.eq.s32.totalorder %s22, 2
      %p129 = por %p127, %p128
      %p131 = scmp.ne.s32.totalorder %s116, %s130
      %p132 = scmp.eq.s32.totalorder %s22, 0
      %p133 = por %p131, %p132
      %s135 = sadd.s32 %s134, 1
      %p138 = scmp.eq.s32.totalorder %s16, 2
      %p139 = scmp.ne.s32.totalorder %s134, %s136
      %p140 = scmp.eq.s32.totalorder %s16, 0
      %p141 = por %p139, %p140
      %p142 = scmp.ne.s32.totalorder %s134, %s136
      %p143 = scmp.eq.s32.totalorder %s21, 2
      %p144 = por %p142, %p143
      %p145 = scmp.ne.s32.totalorder %s136, %s137
      %p146 = scmp.eq.s32.totalorder %s21, 0
      %p147 = por %p145, %p146
      %p148 = scmp.ne.s32.totalorder %s136, %s137
      %p149 = scmp.eq.s32.totalorder %s22, 2
      %p150 = por %p148, %p149
      %p152 = scmp.ne.s32.totalorder %s137, %s151
      %p153 = scmp.eq.s32.totalorder %s22, 0
      %p154 = por %p152, %p153
      %s156 = sadd.s32 %s155, 1
      %p159 = scmp.eq.s32.totalorder %s16, 2
      %p160 = scmp.ne.s32.totalorder %s155, %s157
      %p161 = scmp.eq.s32.totalorder %s16, 0
      %p162 = por %p160, %p161
      %p163 = scmp.ne.s32.totalorder %s155, %s157
      %p164 = scmp.eq.s32.totalorder %s21, 2
      %p165 = por %p163, %p164
      %p166 = scmp.ne.s32.totalorder %s157, %s158
      %p167 = scmp.eq.s32.totalorder %s21, 0
      %p168 = por %p166, %p167
      %p169 = scmp.ne.s32.totalorder %s157, %s158
      %p170 = scmp.eq.s32.totalorder %s22, 2
      %p171 = por %p169, %p170
      %p173 = scmp.ne.s32.totalorder %s158, %s172
      %p174 = scmp.eq.s32.totalorder %s22, 0
      %p175 = por %p173, %p174
      %s176 = ssub.s32 %s16, %s23
      %p177 = scmp.eq.s32.totalorder %s176, 0
      %s179 = sadd.s32 %s178, 1
      %s180 = scalar_select %p177, %s178, %s179
      %p183 = pneg %p177
      %p184 = scmp.eq.s32.totalorder %s16, 2
      %p185 = por %p183, %p184
      %p186 = scmp.ne.s32.totalorder %s178, %s181
      %p187 = scmp.eq.s32.totalorder %s16, 0
      %p188 = por %p186, %p187
      %p189 = scmp.ne.s32.totalorder %s178, %s181
      %p190 = scmp.eq.s32.totalorder %s21, 2
      %p191 = por %p189, %p190
      %p192 = scmp.ne.s32.totalorder %s181, %s182
      %p193 = scmp.eq.s32.totalorder %s21, 0
      %p194 = por %p192, %p193
      %p195 = scmp.ne.s32.totalorder %s181, %s182
      %p196 = scmp.eq.s32.totalorder %s22, 2
      %p197 = por %p195, %p196
      %p199 = scmp.ne.s32.totalorder %s182, %s198
      %p200 = scmp.eq.s32.totalorder %s22, 0
      %p201 = por %p199, %p200
      %s202 = ssub.s32 %s16, %s23
      %p203 = scmp.eq.s32.totalorder %s202, 0
      %s205 = sadd.s32 %s204, 1
      %s206 = scalar_select %p203, %s204, %s205
      %p209 = pneg %p203
      %p210 = scmp.eq.s32.totalorder %s16, 2
      %p211 = por %p209, %p210
      %p212 = scmp.ne.s32.totalorder %s204, %s207
      %p213 = scmp.eq.s32.totalorder %s16, 0
      %p214 = por %p212, %p213
      %p215 = scmp.ne.s32.totalorder %s204, %s207
      %p216 = scmp.eq.s32.totalorder %s21, 2
      %p217 = por %p215, %p216
      %p218 = scmp.ne.s32.totalorder %s207, %s208
      %p219 = scmp.eq.s32.totalorder %s21, 0
      %p220 = por %p218, %p219
      %p221 = scmp.ne.s32.totalorder %s207, %s208
      %p222 = scmp.eq.s32.totalorder %s22, 2
      %p223 = por %p221, %p222
      %p225 = scmp.ne.s32.totalorder %s208, %s224
      %p226 = scmp.eq.s32.totalorder %s22, 0
      %p227 = por %p225, %p226
      %p228 = scmp.le.s32.totalorder 1, %s16
      %p229 = scmp.lt.s32.totalorder %s16, 4
      %p230 = pnand %p228, %p229
      %p231 = pneg %p230
      // Predicated region
      $region9: #{tpu_custom_call.1} parent=5 // pred_check
        _
      $region10: #{tpu_custom_call.1} parent=5 // pred_check_branch
        %233 = sbr.rel (%p230) target = $region12
      $region11: #{tpu_custom_call.1} parent=5 // pred_region
        %s234 = ssub.s32 %s16, 1
        // Predicated region
        $region13: #{tpu_custom_call.1} parent=11 // pred_check
          %p235 = pneg %p63
        $region14: #{tpu_custom_call.1} parent=11 // pred_check_branch
          %237 = sbr.rel (%p235) target = $region16
        $region15: #{tpu_custom_call.1} parent=11 // pred_region
          _
        $region16: #{tpu_custom_call.1} parent=11 // pred_fallthru
          _
        // Predicated region
        $region17: #{tpu_custom_call.1} parent=11 // pred_check
          %p238 = pneg %p84
        $region18: #{tpu_custom_call.1} parent=11 // pred_check_branch
          %240 = sbr.rel (%p238) target = $region20
        $region19: #{tpu_custom_call.1} parent=11 // pred_region
          _
        $region20: #{tpu_custom_call.1} parent=11 // pred_fallthru
          _
        // Predicated region
        $region21: #{tpu_custom_call.1} parent=11 // pred_check
          %p241 = pneg %p105
        $region22: #{tpu_custom_call.1} parent=11 // pred_check_branch
          %243 = sbr.rel (%p241) target = $region24
        $region23: #{tpu_custom_call.1} parent=11 // pred_region
          %s245 = ssub.s32 2048, 2048
          %246 = vsyncadd [#allocation3], %s245
          %s247 = sshll.u32 [#allocation2], 4
          %s248 = int_to_ptr.vmem [resolvable:$true] %s247
          %253 = dma.hbm_to_vmem [thread:$0]  %s3, 2048, %s248, [#allocation3], 128, 128, 8
        $region24: #{tpu_custom_call.1} parent=11 // pred_fallthru
          _
        // Predicated region
        $region25: #{tpu_custom_call.1} parent=11 // pred_check
          %p254 = pneg %p126
        $region26: #{tpu_custom_call.1} parent=11 // pred_check_branch
          %256 = sbr.rel (%p254) target = $region28
        $region27: #{tpu_custom_call.1} parent=11 // pred_region
          _
        $region28: #{tpu_custom_call.1} parent=11 // pred_fallthru
          _
        // Predicated region
        $region29: #{tpu_custom_call.1} parent=11 // pred_check
          %p257 = pneg %p147
        $region30: #{tpu_custom_call.1} parent=11 // pred_check_branch
          %259 = sbr.rel (%p257) target = $region32
        $region31: #{tpu_custom_call.1} parent=11 // pred_region
          %s261 = ssub.s32 6144, 6144
          %262 = vsyncadd [#allocation5], %s261
          %s263 = sshll.u32 [#allocation4], 4
          %s264 = int_to_ptr.vmem [resolvable:$true] %s263
          %269 = dma.hbm_to_vmem [thread:$0]  %s5, 6144, %s264, [#allocation5], 384, 384, 24
        $region32: #{tpu_custom_call.1} parent=11 // pred_fallthru
          _
        // Predicated region
        $region33: #{tpu_custom_call.1} parent=11 // pred_check
          %p270 = pneg %p168
        $region34: #{tpu_custom_call.1} parent=11 // pred_check_branch
          %272 = sbr.rel (%p270) target = $region36
        $region35: #{tpu_custom_call.1} parent=11 // pred_region
          _
        $region36: #{tpu_custom_call.1} parent=11 // pred_fallthru
          _
      $region12: #{tpu_custom_call.1} parent=5 // pred_fallthru
        _
      %p273 = scmp.lt.s32.totalorder %s16, 3
      // Predicated region
      $region37: #{tpu_custom_call.1} parent=5 // pred_check
        %p274 = pneg %p273
      $region38: #{tpu_custom_call.1} parent=5 // pred_check_branch
        %276 = sbr.rel (%p274) target = $region40
      $region39: #{tpu_custom_call.1} parent=5 // pred_region
        // Predicated region
        $region41: #{tpu_custom_call.1} parent=39 // pred_check
          %p277 = pneg %p36
        $region42: #{tpu_custom_call.1} parent=39 // pred_check_branch
          %279 = sbr.rel (%p277) target = $region44
        $region43: #{tpu_custom_call.1} parent=39 // pred_region
          %p280 = scmp.lt.s32.totalorder %s16, 2
          %s281 = scalar_select %p280, %s16, 2
          %s282 = smul.addr %s281, 8
          %s283 = scalar_lea.vmem %s0, %s282
        $region44: #{tpu_custom_call.1} parent=39 // pred_fallthru
          _
        // Predicated region
        $region45: #{tpu_custom_call.1} parent=39 // pred_check
          %p284 = pneg %p188
        $region46: #{tpu_custom_call.1} parent=39 // pred_check_branch
          %286 = sbr.rel (%p284) target = $region48
        $region47: #{tpu_custom_call.1} parent=39 // pred_region
          %p287 = scmp.lt.s32.totalorder %s16, 2
          %s288 = scalar_select %p287, %s16, 2
          %s289 = smul.addr %s288, 8
          %s290 = scalar_lea.vmem %s7, %s289
        $region48: #{tpu_custom_call.1} parent=39 // pred_fallthru
          _
      $region40: #{tpu_custom_call.1} parent=5 // pred_fallthru
        _
      %p291 = scmp.le.s32.totalorder 1, %s16
      %p292 = scmp.lt.s32.totalorder %s16, 4
      %p293 = pnand %p291, %p292
      %p294 = pneg %p293
      // Predicated region
      $region49: #{tpu_custom_call.1} parent=5 // pred_check
        _
      $region50: #{tpu_custom_call.1} parent=5 // pred_check_branch
        %296 = sbr.rel (%p293) target = $region52
      $region51: #{tpu_custom_call.1} parent=5 // pred_region
        %s297 = ssub.s32 %s16, 1
        // Predicated region
        $region53: #{tpu_custom_call.1} parent=51 // pred_check
          %p298 = pneg %p105
        $region54: #{tpu_custom_call.1} parent=51 // pred_check_branch
          %300 = sbr.rel (%p298) target = $region56
        $region55: #{tpu_custom_call.1} parent=51 // pred_region
          %301 = dma.done [#allocation3], 2048
        $region56: #{tpu_custom_call.1} parent=51 // pred_fallthru
          _
        // Predicated region
        $region57: #{tpu_custom_call.1} parent=51 // pred_check
          %p302 = pneg %p147
        $region58: #{tpu_custom_call.1} parent=51 // pred_check_branch
          %304 = sbr.rel (%p302) target = $region60
        $region59: #{tpu_custom_call.1} parent=51 // pred_region
          %305 = dma.done [#allocation5], 6144
        $region60: #{tpu_custom_call.1} parent=51 // pred_fallthru
          _
        %p306 = scmp.lt.s32.totalorder %s21, 2
        %s307 = scalar_select %p306, %s21, 2
        %s308 = smul.addr %s307, 8
        %s309 = scalar_lea.vmem %s0, %s308
        %p310 = pneg %p42
        %p311 = pneg %p39
        %p312 = pneg %p63
        %p313 = pneg %p60
        %p314 = pneg %p84
        %p315 = pneg %p81
        %p316 = pneg %p105
        %p317 = pneg %p102
        %p318 = pneg %p126
        %p319 = pneg %p123
        %p320 = pneg %p147
        %p321 = pneg %p144
        %p322 = pneg %p168
        %p323 = pneg %p165
        %p324 = scmp.lt.s32.totalorder %s21, 2
        %s325 = scalar_select %p324, %s21, 2
        %s326 = smul.addr %s325, 8
        %s327 = scalar_lea.vmem %s7, %s326
        %p328 = pneg %p194
        %p329 = pneg %p191
        %p330 = pneg %p220
        %p331 = pneg %p217
        %p332 = scmp.lt.s32.totalorder %s21, 2
        %s333 = scalar_select %p332, %s21, 2
        %s334 = smul.addr %s333, 8
        %s335 = scalar_lea.vmem %s8, %s334
        %p336 = scmp.lt.s32.totalorder %s21, 2
        %s337 = scalar_select %p336, %s21, 2
        %s338 = smul.addr %s337, 8
        %s339 = scalar_lea.vmem %s0, %s338
        %p340 = scmp.lt.s32.totalorder %s21, 2
        %s341 = scalar_select %p340, %s21, 2
        %s342 = smul.addr %s341, 8
        %s343 = scalar_lea.vmem %s7, %s342
        %p344 = scmp.lt.s32.totalorder %s21, 2
        %s345 = scalar_select %p344, %s21, 2
        %s346 = smul.addr %s345, 8
        %s347 = scalar_lea.vmem %s8, %s346
        %v348 = vld [vmem:[%s339] sm:$0xff]
        %v349 = vld [vmem:[%s1] sm:$0xff]
        %v350 = vld [vmem:[%s1 + $0x8] sm:$0xff]
        %v351 = vld [vmem:[%s2] sm:$0x1]
        %v353 = vlaneseq
        %v354 = vshrl.u32 %v353, 7
        %v355 = vsub.s32 0, %v354
        %v356 = vrot.slane %v351, %v355
        %vm358 = vcmask 130048
        %v360 = vsel %vm358, %v348, 0
        %362 = vmatprep.subr.mxu0 0.0
        %363 = vmatpush1.msra.mxu0 %v349
        %364 = vmatprep.subr.mxu0 0.0
        %365 = vmatpush1.msra.mxu0 %v350
        %366 = vmatprep.subr.mxu0 0.0
        %367 = vmatpush1.msra.mxu0 0.0
        %368 = vmatprep.subr.mxu0 0.0
        %369 = vmatpush1.msra.mxu0 0.0
        %370 = vmatprep.subr.mxu0 0.0
        %371 = vmatpush1.msra.mxu0 0.0
        %372 = vmatprep.subr.mxu0 0.0
        %373 = vmatpush1.msra.mxu0 0.0
        %374 = vmatprep.subr.mxu0 0.0
        %375 = vmatpush1.msra.mxu0 0.0
        %376 = vmatprep.subr.mxu0 0.0
        %377 = vmatpush1.msra.mxu0 0.0
        %378 = vmatprep.subr.mxu0 0.0
        %379 = vmatpush1.msra.mxu0 0.0
        %380 = vmatprep.subr.mxu0 0.0
        %381 = vmatpush1.msra.mxu0 0.0
        %382 = vmatprep.subr.mxu0 0.0
        %383 = vmatpush1.msra.mxu0 0.0
        %384 = vmatprep.subr.mxu0 0.0
        %385 = vmatpush1.msra.mxu0 0.0
        %386 = vmatprep.subr.mxu0 0.0
        %387 = vmatpush1.msra.mxu0 0.0
        %388 = vmatprep.subr.mxu0 0.0
        %389 = vmatpush1.msra.mxu0 0.0
        %390 = vmatprep.subr.mxu0 0.0
        %391 = vmatpush1.msra.mxu0 0.0
        %392 = vmatprep.subr.mxu0 0.0
        %393 = vmatpush1.msra.mxu0 0.0
        %394 = vmatprep.subr.mxu0 0.0
        %395 = vmatpush1.msra.mxu0 0.0
        %396 = vmatprep.subr.mxu0 0.0
        %397 = vmatpush1.msra.mxu0 0.0
        %398 = vmatprep.subr.mxu0 0.0
        %399 = vmatpush1.msra.mxu0 0.0
        %400 = vmatprep.subr.mxu0 0.0
        %401 = vmatpush1.msra.mxu0 0.0
        %402 = vmatprep.subr.mxu0 0.0
        %403 = vmatpush1.msra.mxu0 0.0
        %404 = vmatprep.subr.mxu0 0.0
        %405 = vmatpush1.msra.mxu0 0.0
        %406 = vmatprep.subr.mxu0 0.0
        %407 = vmatpush1.msra.mxu0 0.0
        %408 = vmatprep.subr.mxu0 0.0
        %409 = vmatpush1.msra.mxu0 0.0
        %410 = vmatprep.subr.mxu0 0.0
        %411 = vmatpush1.msra.mxu0 0.0
        %412 = vmatprep.subr.mxu0 0.0
        %413 = vmatpush1.msra.mxu0 0.0
        %414 = vmatprep.subr.mxu0 0.0
        %415 = vmatpush1.msra.mxu0 0.0
        %416 = vmatprep.subr.mxu0 0.0
        %417 = vmatpush1.msra.mxu0 0.0
        %418 = vmatprep.subr.mxu0 0.0
        %419 = vmatpush1.msra.mxu0 0.0
        %420 = vmatprep.subr.mxu0 0.0
        %421 = vmatpush1.msra.mxu0 0.0
        %422 = vmatprep.subr.mxu0 0.0
        %423 = vmatpush1.msra.mxu0 0.0
        %424 = vmatprep.subr.mxu0 0.0
        %425 = vmatpush1.msra.mxu0 0.0
        %426 = vmatprep.mubr.f32.mxu0 0.0
        %427 = vmatmul.mubr.f32.gmra.mrb[0].mxu0 %v360
        %v428 = vpop.f32.mrb[0].mxu0
        %v429 = vadd.f32 %v356, %v428
        %v430 = vpop.f32.mrb[0].mxu0
        %431 = vdwg.mxu0
        %v432 = vtanh.pop %v429
        %v433 = vld [vmem:[#allocation2] sm:$0xff]
        %v434 = vld [vmem:[#allocation2 + $0x8] sm:$0xff]
        %v435 = vld [vmem:[#allocation2 + $0x10] sm:$0xff]
        %v436 = vld [vmem:[#allocation2 + $0x18] sm:$0xff]
        %v437 = vld [vmem:[#allocation2 + $0x20] sm:$0xff]
        %v438 = vld [vmem:[#allocation2 + $0x28] sm:$0xff]
        %v439 = vld [vmem:[#allocation2 + $0x30] sm:$0xff]
        %v440 = vld [vmem:[#allocation2 + $0x38] sm:$0xff]
        %v441 = vld [vmem:[#allocation2 + $0x40] sm:$0xff]
        %v442 = vld [vmem:[#allocation2 + $0x48] sm:$0xff]
        %v443 = vld [vmem:[#allocation2 + $0x50] sm:$0xff]
        %v444 = vld [vmem:[#allocation2 + $0x58] sm:$0xff]
        %v445 = vld [vmem:[#allocation2 + $0x60] sm:$0xff]
        %v446 = vld [vmem:[#allocation2 + $0x68] sm:$0xff]
        %v447 = vld [vmem:[#allocation2 + $0x70] sm:$0xff]
        %v448 = vld [vmem:[#allocation2 + $0x78] sm:$0xff]
        %v449 = vld [vmem:[%s4] sm:$0x1]
        %v451 = vlaneseq
        %v452 = vshrl.u32 %v451, 7
        %v453 = vsub.s32 0, %v452
        %v454 = vrot.slane %v449, %v453
        %456 = vmatprep.subr.mxu0 0.0
        %457 = vmatpush1.msra.mxu0 %v433
        %458 = vmatprep.subr.mxu0 0.0
        %459 = vmatpush1.msra.mxu0 %v434
        %460 = vmatprep.subr.mxu0 0.0
        %461 = vmatpush1.msra.mxu0 %v435
        %462 = vmatprep.subr.mxu0 0.0
        %463 = vmatpush1.msra.mxu0 %v436
        %464 = vmatprep.subr.mxu0 0.0
        %465 = vmatpush1.msra.mxu0 %v437
        %466 = vmatprep.subr.mxu0 0.0
        %467 = vmatpush1.msra.mxu0 %v438
        %468 = vmatprep.subr.mxu0 0.0
        %469 = vmatpush1.msra.mxu0 %v439
        %470 = vmatprep.subr.mxu0 0.0
        %471 = vmatpush1.msra.mxu0 %v440
        %472 = vmatprep.subr.mxu0 0.0
        %473 = vmatpush1.msra.mxu0 %v441
        %474 = vmatprep.subr.mxu0 0.0
        %475 = vmatpush1.msra.mxu0 %v442
        %476 = vmatprep.subr.mxu0 0.0
        %477 = vmatpush1.msra.mxu0 %v443
        %478 = vmatprep.subr.mxu0 0.0
        %479 = vmatpush1.msra.mxu0 %v444
        %480 = vmatprep.subr.mxu0 0.0
        %481 = vmatpush1.msra.mxu0 %v445
        %482 = vmatprep.subr.mxu0 0.0
        %483 = vmatpush1.msra.mxu0 %v446
        %484 = vmatprep.subr.mxu0 0.0
        %485 = vmatpush1.msra.mxu0 %v447
        %486 = vmatprep.subr.mxu0 0.0
        %487 = vmatpush1.msra.mxu0 %v448
        %488 = vmatprep.subr.mxu0 0.0
        %489 = vmatpush1.msra.mxu0 0.0
        %490 = vmatprep.subr.mxu0 0.0
        %491 = vmatpush1.msra.mxu0 0.0
        %492 = vmatprep.subr.mxu0 0.0
        %493 = vmatpush1.msra.mxu0 0.0
        %494 = vmatprep.subr.mxu0 0.0
        %495 = vmatpush1.msra.mxu0 0.0
        %496 = vmatprep.subr.mxu0 0.0
        %497 = vmatpush1.msra.mxu0 0.0
        %498 = vmatprep.subr.mxu0 0.0
        %499 = vmatpush1.msra.mxu0 0.0
        %500 = vmatprep.subr.mxu0 0.0
        %501 = vmatpush1.msra.mxu0 0.0
        %502 = vmatprep.subr.mxu0 0.0
        %503 = vmatpush1.msra.mxu0 0.0
        %504 = vmatprep.subr.mxu0 0.0
        %505 = vmatpush1.msra.mxu0 0.0
        %506 = vmatprep.subr.mxu0 0.0
        %507 = vmatpush1.msra.mxu0 0.0
        %508 = vmatprep.subr.mxu0 0.0
        %509 = vmatpush1.msra.mxu0 0.0
        %510 = vmatprep.subr.mxu0 0.0
        %511 = vmatpush1.msra.mxu0 0.0
        %512 = vmatprep.subr.mxu0 0.0
        %513 = vmatpush1.msra.mxu0 0.0
        %514 = vmatprep.subr.mxu0 0.0
        %515 = vmatpush1.msra.mxu0 0.0
        %516 = vmatprep.subr.mxu0 0.0
        %517 = vmatpush1.msra.mxu0 0.0
        %518 = vmatprep.subr.mxu0 0.0
        %519 = vmatpush1.msra.mxu0 0.0
        %520 = vmatprep.mubr.f32.mxu0 0.0
        %521 = vmatmul.mubr.f32.gmra.mrb[0].mxu0 %v432
        %v522 = vpop.f32.mrb[0].mxu0
        %v523 = vadd.f32 %v454, %v522
        %v524 = vpop.f32.mrb[0].mxu0
        %525 = vdwg.mxu0
        %v526 = vtanh.pop %v523
        %v527 = vld [vmem:[#allocation4] sm:$0xff]
        %v528 = vld [vmem:[#allocation4 + $0x8] sm:$0xff]
        %v529 = vld [vmem:[#allocation4 + $0x10] sm:$0xff]
        %v530 = vld [vmem:[#allocation4 + $0x18] sm:$0xff]
        %v531 = vld [vmem:[#allocation4 + $0x20] sm:$0xff]
        %v532 = vld [vmem:[#allocation4 + $0x28] sm:$0xff]
        %v533 = vld [vmem:[#allocation4 + $0x30] sm:$0xff]
        %v534 = vld [vmem:[#allocation4 + $0x38] sm:$0xff]
        %v535 = vld [vmem:[#allocation4 + $0x40] sm:$0xff]
        %v536 = vld [vmem:[#allocation4 + $0x48] sm:$0xff]
        %v537 = vld [vmem:[#allocation4 + $0x50] sm:$0xff]
        %v538 = vld [vmem:[#allocation4 + $0x58] sm:$0xff]
        %v539 = vld [vmem:[#allocation4 + $0x60] sm:$0xff]
        %v540 = vld [vmem:[#allocation4 + $0x68] sm:$0xff]
        %v541 = vld [vmem:[#allocation4 + $0x70] sm:$0xff]
        %v542 = vld [vmem:[#allocation4 + $0x78] sm:$0xff]
        %v543 = vld [vmem:[#allocation4 + $0x80] sm:$0xff]
        %v544 = vld [vmem:[#allocation4 + $0x88] sm:$0xff]
        %v545 = vld [vmem:[#allocation4 + $0x90] sm:$0xff]
        %v546 = vld [vmem:[#allocation4 + $0x98] sm:$0xff]
        %v547 = vld [vmem:[#allocation4 + $0xa0] sm:$0xff]
        %v548 = vld [vmem:[#allocation4 + $0xa8] sm:$0xff]
        %v549 = vld [vmem:[#allocation4 + $0xb0] sm:$0xff]
        %v550 = vld [vmem:[#allocation4 + $0xb8] sm:$0xff]
        %v551 = vld [vmem:[#allocation4 + $0xc0] sm:$0xff]
        %v552 = vld [vmem:[#allocation4 + $0xc8] sm:$0xff]
        %v553 = vld [vmem:[#allocation4 + $0xd0] sm:$0xff]
        %v554 = vld [vmem:[#allocation4 + $0xd8] sm:$0xff]
        %v555 = vld [vmem:[#allocation4 + $0xe0] sm:$0xff]
        %v556 = vld [vmem:[#allocation4 + $0xe8] sm:$0xff]
        %v557 = vld [vmem:[#allocation4 + $0xf0] sm:$0xff]
        %v558 = vld [vmem:[#allocation4 + $0xf8] sm:$0xff]
        %v559 = vld [vmem:[#allocation4 + $0x100] sm:$0xff]
        %v560 = vld [vmem:[#allocation4 + $0x108] sm:$0xff]
        %v561 = vld [vmem:[#allocation4 + $0x110] sm:$0xff]
        %v562 = vld [vmem:[#allocation4 + $0x118] sm:$0xff]
        %v563 = vld [vmem:[#allocation4 + $0x120] sm:$0xff]
        %v564 = vld [vmem:[#allocation4 + $0x128] sm:$0xff]
        %v565 = vld [vmem:[#allocation4 + $0x130] sm:$0xff]
        %v566 = vld [vmem:[#allocation4 + $0x138] sm:$0xff]
        %v567 = vld [vmem:[#allocation4 + $0x140] sm:$0xff]
        %v568 = vld [vmem:[#allocation4 + $0x148] sm:$0xff]
        %v569 = vld [vmem:[#allocation4 + $0x150] sm:$0xff]
        %v570 = vld [vmem:[#allocation4 + $0x158] sm:$0xff]
        %v571 = vld [vmem:[#allocation4 + $0x160] sm:$0xff]
        %v572 = vld [vmem:[#allocation4 + $0x168] sm:$0xff]
        %v573 = vld [vmem:[#allocation4 + $0x170] sm:$0xff]
        %v574 = vld [vmem:[#allocation4 + $0x178] sm:$0xff]
        %v575 = vld [vmem:[%s6] sm:$0x7]
        %v577 = vlaneseq
        %v578 = vshrl.u32 %v577, 7
        %v579 = vsub.s32 0, %v578
        %v580 = vrot.slane %v575, %v579
        %v581 = vlaneseq
        %v582 = vshrl.u32 %v581, 7
        %v583 = vsub.s32 1, %v582
        %v584 = vrot.slane %v575, %v583
        %v585 = vlaneseq
        %v586 = vshrl.u32 %v585, 7
        %v587 = vsub.s32 2, %v586
        %v588 = vrot.slane %v575, %v587
        %592 = vmatprep.subr.mxu0 %v528
        %593 = vmatpush1.msra.mxu0 %v527
        %594 = vmatprep.subr.mxu0 %v531
        %595 = vmatpush1.msra.mxu0 %v530
        %596 = vmatprep.subr.mxu0 %v534
        %597 = vmatpush1.msra.mxu0 %v533
        %598 = vmatprep.subr.mxu0 %v537
        %599 = vmatpush1.msra.mxu0 %v536
        %600 = vmatprep.subr.mxu0 %v540
        %601 = vmatpush1.msra.mxu0 %v539
        %602 = vmatprep.subr.mxu0 %v543
        %603 = vmatpush1.msra.mxu0 %v542
        %604 = vmatprep.subr.mxu0 %v546
        %605 = vmatpush1.msra.mxu0 %v545
        %606 = vmatprep.subr.mxu0 %v549
        %607 = vmatpush1.msra.mxu0 %v548
        %608 = vmatprep.subr.mxu0 %v552
        %609 = vmatpush1.msra.mxu0 %v551
        %610 = vmatprep.subr.mxu0 %v555
        %611 = vmatpush1.msra.mxu0 %v554
        %612 = vmatprep.subr.mxu0 %v558
        %613 = vmatpush1.msra.mxu0 %v557
        %614 = vmatprep.subr.mxu0 %v561
        %615 = vmatpush1.msra.mxu0 %v560
        %616 = vmatprep.subr.mxu0 %v564
        %617 = vmatpush1.msra.mxu0 %v563
        %618 = vmatprep.subr.mxu0 %v567
        %619 = vmatpush1.msra.mxu0 %v566
        %620 = vmatprep.subr.mxu0 %v570
        %621 = vmatpush1.msra.mxu0 %v569
        %622 = vmatprep.subr.mxu0 %v573
        %623 = vmatpush1.msra.mxu0 %v572
        %624 = vmatprep.subr.mxu0 0.0
        %625 = vmatpush1.msra.mxu0 0.0
        %626 = vmatprep.subr.mxu0 0.0
        %627 = vmatpush1.msra.mxu0 0.0
        %628 = vmatprep.subr.mxu0 0.0
        %629 = vmatpush1.msra.mxu0 0.0
        %630 = vmatprep.subr.mxu0 0.0
        %631 = vmatpush1.msra.mxu0 0.0
        %632 = vmatprep.subr.mxu0 0.0
        %633 = vmatpush1.msra.mxu0 0.0
        %634 = vmatprep.subr.mxu0 0.0
        %635 = vmatpush1.msra.mxu0 0.0
        %636 = vmatprep.subr.mxu0 0.0
        %637 = vmatpush1.msra.mxu0 0.0
        %638 = vmatprep.subr.mxu0 0.0
        %639 = vmatpush1.msra.mxu0 0.0
        %640 = vmatprep.subr.mxu0 0.0
        %641 = vmatpush1.msra.mxu0 0.0
        %642 = vmatprep.subr.mxu0 0.0
        %643 = vmatpush1.msra.mxu0 0.0
        %644 = vmatprep.subr.mxu0 0.0
        %645 = vmatpush1.msra.mxu0 0.0
        %646 = vmatprep.subr.mxu0 0.0
        %647 = vmatpush1.msra.mxu0 0.0
        %648 = vmatprep.subr.mxu0 0.0
        %649 = vmatpush1.msra.mxu0 0.0
        %650 = vmatprep.subr.mxu0 0.0
        %651 = vmatpush1.msra.mxu0 0.0
        %652 = vmatprep.subr.mxu0 0.0
        %653 = vmatpush1.msra.mxu0 0.0
        %654 = vmatprep.subr.mxu0 0.0
        %655 = vmatpush1.msra.mxu0 0.0
        %656 = vmatprep.mubr.f32.mxu0 0.0
        %657 = vmatmul.mubr.f32.gmra.mrb[0].mxu0 %v526
        %v658 = vpop.f32.mrb[0].mxu0
        %v659 = vadd.f32 %v580, %v658
        %v660 = vpop.f32.mrb[0].mxu0
        %v661 = vadd.f32 %v584, %v660
        %662 = vdwg.mxu0
        %663 = vmatprep.subr.mxu0 0.0
        %664 = vmatpush1.msra.mxu0 %v529
        %665 = vmatprep.subr.mxu0 0.0
        %666 = vmatpush1.msra.mxu0 %v532
        %667 = vmatprep.subr.mxu0 0.0
        %668 = vmatpush1.msra.mxu0 %v535
        %669 = vmatprep.subr.mxu0 0.0
        %670 = vmatpush1.msra.mxu0 %v538
        %671 = vmatprep.subr.mxu0 0.0
        %672 = vmatpush1.msra.mxu0 %v541
        %673 = vmatprep.subr.mxu0 0.0
        %674 = vmatpush1.msra.mxu0 %v544
        %675 = vmatprep.subr.mxu0 0.0
        %676 = vmatpush1.msra.mxu0 %v547
        %677 = vmatprep.subr.mxu0 0.0
        %678 = vmatpush1.msra.mxu0 %v550
        %679 = vmatprep.subr.mxu0 0.0
        %680 = vmatpush1.msra.mxu0 %v553
        %681 = vmatprep.subr.mxu0 0.0
        %682 = vmatpush1.msra.mxu0 %v556
        %683 = vmatprep.subr.mxu0 0.0
        %684 = vmatpush1.msra.mxu0 %v559
        %685 = vmatprep.subr.mxu0 0.0
        %686 = vmatpush1.msra.mxu0 %v562
        %687 = vmatprep.subr.mxu0 0.0
        %688 = vmatpush1.msra.mxu0 %v565
        %689 = vmatprep.subr.mxu0 0.0
        %690 = vmatpush1.msra.mxu0 %v568
        %691 = vmatprep.subr.mxu0 0.0
        %692 = vmatpush1.msra.mxu0 %v571
        %693 = vmatprep.subr.mxu0 0.0
        %694 = vmatpush1.msra.mxu0 %v574
        %695 = vmatprep.subr.mxu0 0.0
        %696 = vmatpush1.msra.mxu0 0.0
        %697 = vmatprep.subr.mxu0 0.0
        %698 = vmatpush1.msra.mxu0 0.0
        %699 = vmatprep.subr.mxu0 0.0
        %700 = vmatpush1.msra.mxu0 0.0
        %701 = vmatprep.subr.mxu0 0.0
        %702 = vmatpush1.msra.mxu0 0.0
        %703 = vmatprep.subr.mxu0 0.0
        %704 = vmatpush1.msra.mxu0 0.0
        %705 = vmatprep.subr.mxu0 0.0
        %706 = vmatpush1.msra.mxu0 0.0
        %707 = vmatprep.subr.mxu0 0.0
        %708 = vmatpush1.msra.mxu0 0.0
        %709 = vmatprep.subr.mxu0 0.0
        %710 = vmatpush1.msra.mxu0 0.0
        %711 = vmatprep.subr.mxu0 0.0
        %712 = vmatpush1.msra.mxu0 0.0
        %713 = vmatprep.subr.mxu0 0.0
        %714 = vmatpush1.msra.mxu0 0.0
        %715 = vmatprep.subr.mxu0 0.0
        %716 = vmatpush1.msra.mxu0 0.0
        %717 = vmatprep.subr.mxu0 0.0
        %718 = vmatpush1.msra.mxu0 0.0
        %719 = vmatprep.subr.mxu0 0.0
        %720 = vmatpush1.msra.mxu0 0.0
        %721 = vmatprep.subr.mxu0 0.0
        %722 = vmatpush1.msra.mxu0 0.0
        %723 = vmatprep.subr.mxu0 0.0
        %724 = vmatpush1.msra.mxu0 0.0
        %725 = vmatprep.subr.mxu0 0.0
        %726 = vmatpush1.msra.mxu0 0.0
        %727 = vmatprep.mubr.f32.mxu0 0.0
        %728 = vmatmul.mubr.f32.gmra.mrb[0].mxu0 %v526
        %v729 = vpop.f32.mrb[0].mxu0
        %v730 = vadd.f32 %v588, %v729
        %v731 = vpop.f32.mrb[0].mxu0
        %732 = vdwg.mxu0
        %v733 = vld [vmem:[%s343] sm:$0xff]
        %vm734 = vcmp.eq.s32.totalorder %v733, 1
        %v735 = vsel %vm734, 1, 0
        %736 = vset.pattern.permute.xlu0 0
        %737 = vperm.xlu0 %736, %v735
        %v738 = vpop.permute.xlu0 %737
        %vm739 = vcmp.eq.s32.totalorder %v738, 1
        %v740 = vsel %vm739, %v661, %v659
        %741 = vmax.xlane.f32.xlu0 %v740
        %v742 = vpop.xlane.xlu0 %741
        %v743 = vsub.f32 %v740, %v742
        %v744 = vmul.f32 %v743, 1.442695
        %v745 = vpow.pop %v744
        %746 = vadd.xlane.f32.xlu0 %v745
        %v747 = vpop.xlane.xlu0 %746
        %v748 = vlog2.pop %v747
        %v749 = vmul.f32 %v748, 0.6931472
        %v750 = vlaneseq
        %v751 = vand.u32 %v750, 127
        %752 = vset.pattern.permute.xlu0 1
        %753 = vperm.xlu0 %752, %v733
        %v754 = vpop.permute.xlu0 %753
        %vm755 = vcmp.eq.s32.totalorder %v751, %v754
        %v756 = vsel %vm755, %v743, 0.0
        %757 = vadd.xlane.f32.xlu0 %v756
        %v758 = vpop.xlane.xlu0 %757
        %v759 = vsub.f32 %v758, %v749
        %v760 = vmul.f32 %v745, %v743
        %761 = vadd.xlane.f32.xlu0 %v760
        %v762 = vpop.xlane.xlu0 %761
        %v763 = vrcp.pop %v747
        %v764 = vmul.f32 %v762, %v763
        %v765 = vsub.f32 %v749, %v764
        %vm766 = vcmp.eq.s32.totalorder %v751, 0
        %vm767 = vcmp.eq.s32.totalorder %v751, 1
        %vm768 = vcmp.eq.s32.totalorder %v751, 2
        %770 = vset.pattern.permute.xlu0 0
        %771 = vperm.xlu0 %770, %v730
        %v772 = vpop.permute.xlu0 %771
        %v774 = vsel %vm768, %v772, 0.0
        %v775 = vsel %vm767, %v765, %v774
        %v776 = vsel %vm766, %v759, %v775
        %vm777 = vcmask 64512
        %778 = vst.msk [vmem:[%s347] sm:$0xff] %vm777, %v776
        %p779 = scmp.lt.s32.totalorder %s21, 2
        %s780 = scalar_select %p779, %s21, 2
        %s781 = smul.addr %s780, 8
        %s782 = scalar_lea.vmem %s8, %s781
        // Predicated region
        $region61: #{tpu_custom_call.1} parent=51 // pred_check
          %p783 = pneg %p217
        $region62: #{tpu_custom_call.1} parent=51 // pred_check_branch
          %785 = sbr.rel (%p783) target = $region64
        $region63: #{tpu_custom_call.1} parent=51 // pred_region
          _
        $region64: #{tpu_custom_call.1} parent=51 // pred_fallthru
          _
      $region52: #{tpu_custom_call.1} parent=5 // pred_fallthru
        _
      %p786 = scmp.le.s32.totalorder 2, %s16
      // Predicated region
      $region65: #{tpu_custom_call.1} parent=5 // pred_check
        %p787 = pneg %p786
      $region66: #{tpu_custom_call.1} parent=5 // pred_check_branch
        %789 = sbr.rel (%p787) target = $region68
      $region67: #{tpu_custom_call.1} parent=5 // pred_region
        %s790 = ssub.s32 %s16, 2
        // Predicated region
        $region69: #{tpu_custom_call.1} parent=67 // pred_check
          %p791 = pneg %p223
        $region70: #{tpu_custom_call.1} parent=67 // pred_check_branch
          %793 = sbr.rel (%p791) target = $region72
        $region71: #{tpu_custom_call.1} parent=67 // pred_region
          %p794 = scmp.lt.s32.totalorder %s22, 2
          %s795 = scalar_select %p794, %s22, 2
          %s796 = smul.addr %s795, 8
          %s797 = scalar_lea.vmem %s8, %s796
        $region72: #{tpu_custom_call.1} parent=67 // pred_fallthru
          _
      $region68: #{tpu_custom_call.1} parent=5 // pred_fallthru
        _
    $region6: #{tpu_custom_call.1} parent=1 // loop_footer
      %s20 = sadd.s32 1, %s16
    $region7: #{tpu_custom_call.1} parent=1 // loop_footer_branch
      %15 = sbr.rel target = $region3
    $region8: #{tpu_custom_call.1} parent=1 // loop_exit
      _
    %798 = vsyncpa [#allocation3], 1
    %s799 = scalar_lea.sflag [#allocation3], 1
    %800 = vsyncpa %s799, 1
    %801 = vsyncpa [#allocation5], 1

</llo_original>
